<compile_context>
chip_gen: v5e
topology: v5e:2x2
jax: 0.10.0
libtpu: 0.0.40
codegen_flags: <defaults>
</compile_context>

<pallas_src>
import functools

import jax
import jax.numpy as jnp
from jax.experimental import pallas as pl
from jax.experimental.pallas import tpu as pltpu


def _im_partials_kernel(x_ref, class_ref, ent_ref, *, n_total, tile_n):
    # x_ref:     VMEM (tile_n, C)   logits block, native dtype.
    # class_ref: VMEM (1, 1, C) f32 sum over the block's valid rows of softmax(x).
    # ent_ref:   VMEM (1, 1, C) f32 sum over valid rows of -p * log(p), per class.
    i = pl.program_id(0)
    c = x_ref.shape[1]

    x = x_ref[...].astype(jnp.float32)   # in-kernel cast: halves HBM traffic for bf16

    # Rows past N (padded DMA of the last partial block) may hold garbage/NaN:
    # zero the logits first (softmax stays finite) and zero p afterwards so the
    # padded rows contribute exactly nothing to either partial sum.  Only
    # materialized when a partial block exists at all; for full blocks it is
    # cheap VPU work hidden under the EUP-bound exp.
    needs_mask = (n_total % tile_n) != 0
    if needs_mask:
        rows = i * tile_n + jax.lax.broadcasted_iota(jnp.int32, (tile_n, 1), 0)
        valid = rows < n_total
        x = jnp.where(valid, x, 0.0)

    # Numerically-stable softmax over classes (dim=1), log-softmax form:
    #   log p = (x - m) - log(denom)   =>   -p*log(p) = p * (log(denom) - (x - m))
    # One exp per ELEMENT; log + approx reciprocal per ROW only.
    m = jnp.max(x, axis=1, keepdims=True)
    shifted = x - m
    e = jnp.exp(shifted)
    denom = jnp.sum(e, axis=1, keepdims=True)        # >= 1 after max-subtraction
    p = e * pl.reciprocal(denom, approx=True)        # per-row EUP rcp
    logd = jnp.log(denom)                            # (tile_n, 1): one log per row
    if needs_mask:
        p = jnp.where(valid, p, 0.0)

    # NOTE: PyTorch's Entropy() computes -p*log(p + 1e-5); the log-softmax form
    # drops the +1e-5 (deviation <= C*1e-5 per row, covered by the tolerance).
    cls_part = jnp.sum(p, axis=0, keepdims=True)                      # (1, C)
    ent_part = jnp.sum(p * (logd - shifted), axis=0, keepdims=True)   # (1, C)

    # Sublane-only reduces above; the lane (class) reduce of ent_part and the
    # normalization / class-entropy log happen once in the wrapper finalize.
    class_ref[...] = cls_part.reshape(1, 1, c)
    ent_ref[...] = ent_part.reshape(1, 1, c)


def _round_up(x, m):
    return ((x + m - 1) // m) * m


def _pick_tile_n(n, c, itemsize):
    # VMEM budget per grid step.  Count lane padding (vregs are 128 lanes wide,
    # so a [rows, C] buffer with C < 128 still occupies 128 lanes) and ~6 f32
    # temporaries (x, shifted, e, p, p*(logd-shifted), mask/misc) on top of the
    # double-buffered input block.  ~10 MiB stays under every chip's default
    # scoped VMEM (16 MiB v5e, 32 MiB v6e/v7x) with headroom.
    c_lanes = _round_up(c, 128)
    bytes_per_row = c_lanes * (2 * itemsize + 6 * 4)
    budget = 10 * 1024 * 1024
    tile = max(8, (budget // bytes_per_row) // 8 * 8)
    # Cap rows per step so large-N inputs still produce several grid steps
    # (megacore "parallel" split); the real constraint is bytes, not a row count.
    tile = min(tile, 16384)
    return min(tile, _round_up(n, 8))


def information_maximization_loss(pred_prob, epsilon, tile_n=None):
    """pred_prob: [N, C] logits (any float dtype); epsilon: python float.

    Returns the scalar im_loss (f32), matching the PyTorch module's forward."""
    n, c = pred_prob.shape
    epsilon = float(epsilon)

    itemsize = jnp.dtype(pred_prob.dtype).itemsize
    if tile_n is None:
        tile_n = _pick_tile_n(n, c, itemsize)
    else:
        tile_n = max(8, min(_round_up(int(tile_n), 8), _round_up(n, 8)))

    num_blocks = pl.cdiv(n, tile_n)

    kernel = functools.partial(_im_partials_kernel, n_total=n, tile_n=tile_n)

    class_parts, ent_parts = pl.pallas_call(
        kernel,
        out_shape=(
            jax.ShapeDtypeStruct((num_blocks, 1, c), jnp.float32),
            jax.ShapeDtypeStruct((num_blocks, 1, c), jnp.float32),
        ),
        grid_spec=pltpu.PrefetchScalarGridSpec(
            num_scalar_prefetch=0,
            grid=(num_blocks,),
            in_specs=[pl.BlockSpec((tile_n, c), lambda i: (i, 0))],
            out_specs=(
                pl.BlockSpec((1, 1, c), lambda i: (i, 0, 0)),
                pl.BlockSpec((1, 1, c), lambda i: (i, 0, 0)),
            ),
        ),
        compiler_params=pltpu.CompilerParams(
            # Per-block outputs -> no shared accumulator -> the batch axis is
            # safely "parallel" (v7x's 2 TensorCores split it; serial elsewhere).
            dimension_semantics=("parallel",),
            vmem_limit_bytes=32 * 1024 * 1024,
        ),
    )(pred_prob)

    # Tiny O(num_blocks * C) finalize in plain JAX: normalize by the true N,
    # lane-reduce the entropy partials, and apply the class-entropy log with the
    # user-supplied epsilon (kept exactly as in the PyTorch forward).
    inv_n = jnp.float32(1.0 / n)
    ins_entropy = jnp.sum(ent_parts) * inv_n
    msoftmax = jnp.sum(class_parts, axis=(0, 1)) * inv_n            # (C,)
    class_entropy = jnp.sum(-msoftmax * jnp.log(msoftmax + jnp.float32(epsilon)))
    return ins_entropy - class_entropy


def _reference(pred_prob, epsilon):
    # Pure-JAX mirror of the PyTorch module (keeps the +1e-5 inside Entropy()).
    p = jax.nn.softmax(pred_prob.astype(jnp.float32), axis=1)
    ins = jnp.mean(jnp.sum(-p * jnp.log(p + 1e-5), axis=1))
    mp = jnp.mean(p, axis=0)
    cls = jnp.sum(-mp * jnp.log(mp + epsilon))
    return ins - cls


if __name__ == "__main__":
    epsilon = 1e-5

    # Tolerance: ~2e-3 numerical (approx reciprocal, f32 exp/log) plus ~C*1e-5
    # for the documented omission of the +1e-5 inside the instance-entropy log.
    atol = rtol = 2.5e-3

    # Case 1: tiny batch, single block (grid of 1, no mask).
    x1 = jax.random.normal(jax.random.PRNGKey(0), (8, 32), dtype=jnp.float32)
    l1 = information_maximization_loss(x1, epsilon)
    jax.block_until_ready(l1)
    r1 = _reference(x1, epsilon)
    assert jnp.allclose(l1, r1, atol=atol, rtol=rtol), (l1, r1)

    # Case 2: multi-block batch with a masked partial last block
    # (N=20, tile_n=8 -> 3 "parallel" grid steps, last block has 4 valid rows).
    x2 = jax.random.normal(jax.random.PRNGKey(1), (20, 32), dtype=jnp.float32)
    l2 = information_maximization_loss(x2, epsilon, tile_n=8)
    jax.block_until_ready(l2)
    r2 = _reference(x2, epsilon)
    assert jnp.allclose(l2, r2, atol=atol, rtol=rtol), (l2, r2)

    # Case 3: bf16 logits exercise the in-kernel dtype cast (halved HBM traffic).
    x3 = jax.random.normal(jax.random.PRNGKey(2), (24, 32), dtype=jnp.bfloat16)
    l3 = information_maximization_loss(x3, epsilon)
    jax.block_until_ready(l3)
    r3 = _reference(x3, epsilon)
    assert jnp.allclose(l3, r3, atol=atol, rtol=rtol), (l3, r3)

    print("KERNEL_OK")
</pallas_src>

<mosaic_0001>
module attributes {stable_mosaic.version = 11 : i64} {
  func.func @_im_partials_kernel(%arg0: i32, %arg1: memref<8x32xf32, #tpu.memory_space<vmem>>, %arg2: memref<1x1x32xf32, #tpu.memory_space<vmem>>, %arg3: memref<1x1x32xf32, #tpu.memory_space<vmem>>) attributes {dimension_semantics = [#tpu.dimension_semantics<parallel>], iteration_bounds = array<i64: 1>, scalar_prefetch = 0 : i64, scratch_operands = 0 : i64, tpu.core_type = #tpu.core_type<tc>, window_params = [{transform_indices = @transform_0, window_bounds = array<i64: 8, 32>}, {transform_indices = @transform_1, window_bounds = array<i64: 1, 1, 32>}, {transform_indices = @transform_2, window_bounds = array<i64: 1, 1, 32>}]} {
    %c0 = arith.constant 0 : index
    %c0_0 = arith.constant 0 : index
    %0 = vector.load %arg1[%c0, %c0_0] : memref<8x32xf32, #tpu.memory_space<vmem>>, vector<8x32xf32>
    %cst = arith.constant dense<0xFF800000> : vector<8xf32>
    %1 = vector.multi_reduction <maximumf>, %0, %cst [1] : vector<8x32xf32> to vector<8xf32>
    %2 = vector.shape_cast %1 : vector<8xf32> to vector<8x1xf32>
    %3 = vector.broadcast %2 : vector<8x1xf32> to vector<8x32xf32>
    %4 = arith.subf %0, %3 : vector<8x32xf32>
    %5 = math.exp %4 : vector<8x32xf32>
    %cst_1 = arith.constant dense<0.000000e+00> : vector<8xf32>
    %6 = vector.multi_reduction <add>, %5, %cst_1 [1] : vector<8x32xf32> to vector<8xf32>
    %7 = vector.shape_cast %6 : vector<8xf32> to vector<8x1xf32>
    %8 = tpu.reciprocal %7 {approx = true} : vector<8x1xf32> -> vector<8x1xf32>
    %9 = vector.broadcast %8 : vector<8x1xf32> to vector<8x32xf32>
    %10 = arith.mulf %5, %9 : vector<8x32xf32>
    %11 = math.log %7 : vector<8x1xf32>
    %cst_2 = arith.constant dense<0.000000e+00> : vector<32xf32>
    %12 = vector.multi_reduction <add>, %10, %cst_2 [0] : vector<8x32xf32> to vector<32xf32>
    %13 = vector.shape_cast %12 : vector<32xf32> to vector<1x32xf32>
    %14 = vector.broadcast %11 : vector<8x1xf32> to vector<8x32xf32>
    %15 = arith.subf %14, %4 : vector<8x32xf32>
    %16 = arith.mulf %10, %15 : vector<8x32xf32>
    %cst_3 = arith.constant dense<0.000000e+00> : vector<32xf32>
    %17 = vector.multi_reduction <add>, %16, %cst_3 [0] : vector<8x32xf32> to vector<32xf32>
    %18 = vector.shape_cast %17 : vector<32xf32> to vector<1x32xf32>
    %19 = vector.shape_cast %13 : vector<1x32xf32> to vector<1x1x32xf32>
    %c0_4 = arith.constant 0 : index
    %c0_5 = arith.constant 0 : index
    %c0_6 = arith.constant 0 : index
    %20 = vector.load %arg2[%c0_4, %c0_5, %c0_6] : memref<1x1x32xf32, #tpu.memory_space<vmem>>, vector<1x1x32xf32>
    tpu.vector_store %arg2[%c0_4, %c0_5, %c0_6], %19 {strides = array<i32>} : memref<1x1x32xf32, #tpu.memory_space<vmem>>, vector<1x1x32xf32>,
    %21 = vector.shape_cast %18 : vector<1x32xf32> to vector<1x1x32xf32>
    %c0_7 = arith.constant 0 : index
    %c0_8 = arith.constant 0 : index
    %c0_9 = arith.constant 0 : index
    %22 = vector.load %arg3[%c0_7, %c0_8, %c0_9] : memref<1x1x32xf32, #tpu.memory_space<vmem>>, vector<1x1x32xf32>
    tpu.vector_store %arg3[%c0_7, %c0_8, %c0_9], %21 {strides = array<i32>} : memref<1x1x32xf32, #tpu.memory_space<vmem>>, vector<1x1x32xf32>,
    return
  }
  func.func @transform_0(%arg0: i32) -> (i32, i32) {
    %c0_i32 = arith.constant 0 : i32
    %c0_i32_0 = arith.constant 0 : i32
    return %arg0, %c0_i32 : i32, i32
  }
  func.func @transform_1(%arg0: i32) -> (i32, i32, i32) {
    %c0_i32 = arith.constant 0 : i32
    %c0_i32_0 = arith.constant 0 : i32
    %c0_i32_1 = arith.constant 0 : i32
    return %arg0, %c0_i32, %c0_i32_0 : i32, i32, i32
  }
  func.func @transform_2(%arg0: i32) -> (i32, i32, i32) {
    %c0_i32 = arith.constant 0 : i32
    %c0_i32_0 = arith.constant 0 : i32
    %c0_i32_1 = arith.constant 0 : i32
    return %arg0, %c0_i32, %c0_i32_0 : i32, i32, i32
  }
}

</mosaic_0001>

<llo_original>
// kernel: tpu_custom_call.1
$region0: #{tpu_custom_call.1}
  #allocation0 [shape = 'u32[]', space=smem, size = 0x4, offset = 0x4, fixed_abs, tag = 'smem constant byte address 0x4 - core index']
  #allocation1 [shape = 'u32[72,128]{1,0:T(1,128)}', space=vmem, size = 0x9000, scoped, tag = 'internal scratch']
  %s0 = inlined_call_operand.hbm [shape: f32[8,32], index: 0, kind: input, shape index: {}]
  %s1 = inlined_call_operand.hbm [shape: f32[1,1,32], index: 1, kind: output, shape index: {0}]
  %s2 = inlined_call_operand.hbm [shape: f32[1,1,32], index: 2, kind: output, shape index: {1}]
  %3 = xla_tuple %s1, %s2
  %s4 = sld [smem:[#allocation0]]
  $region26: #{tpu_custom_call.1} parent=0
    _
  %s6 = ssub.s32 1, %s4
  %s7 = scalar_select 0, %s6, %s4
  $region1: #{tpu_custom_call.1} parent=0
    #allocation2 [shape = 'u8[4096]{0}', space=vmem, size = 0x1000, scoped, tag = 'input window, operand 0, single buffered']
    #allocation3 [shape = 's32[1]{0}', space=sflag, size = 0x4, scoped, tag = 'scoped memory for tpu_custom_call.1']
    #allocation4 [shape = 's32[1]{0}', space=sflag, size = 0x4, scoped, tag = 'scoped memory for tpu_custom_call.1']
    #allocation5 [shape = 'u8[512]{0}', space=vmem, size = 0x400, scoped, tag = 'output window, operand 0, single buffered']
    #allocation6 [shape = 'u8[512]{0}', space=vmem, size = 0x400, scoped, tag = 'output window, operand 1, single buffered']
    #allocation7 [shape = 's32[1]{0}', space=sflag, size = 0x4, scoped, tag = 'scoped memory for tpu_custom_call.1']
    %8 = vsyncpa [#allocation3], 0
    %9 = vsyncpa [#allocation4], 0
    %10 = vsyncpa [#allocation7], 0
    // Predicated region
    $region2: #{tpu_custom_call.1} parent=1 // pred_check
      _
    $region3: #{tpu_custom_call.1} parent=1 // pred_check_branch
      %12 = sbr.rel (0) target = $region5
    $region4: #{tpu_custom_call.1} parent=1 // pred_region
      %14 = vsyncadd [#allocation3], 0
      %s16 = sshll.u32 %s0, 4
      %s17 = int_to_ptr.hbm [resolvable:$true] %s16
      %s18 = sshll.u32 [#allocation2], 4
      %s19 = int_to_ptr.vmem [resolvable:$true] %s18
      %21 = dma.hbm_to_vmem [thread:$0]  %s17, 128, %s19, [#allocation3]
    $region5: #{tpu_custom_call.1} parent=1 // pred_fallthru
      _
    // Predicated region
    $region6: #{tpu_custom_call.1} parent=1 // pred_check
      _
    $region7: #{tpu_custom_call.1} parent=1 // pred_check_branch
      %23 = sbr.rel (0) target = $region9
    $region8: #{tpu_custom_call.1} parent=1 // pred_region
      %25 = dma.done [#allocation3], 128
    $region9: #{tpu_custom_call.1} parent=1 // pred_fallthru
      _
    %v26 = vld [vmem:[#allocation2] sm:$0xff]
    %vm27 = vcmask 261120
    %v28 = vsel %vm27, %v26, -inf
    %29 = vmax.xlane.f32.xlu0 %v28
    %v30 = vpop.xlane.xlu0 %29
    %v31 = vsub.f32 %v26, %v30
    %v32 = vmul.f32 %v31, 1.442695
    %v33 = vpow.pop %v32
    %v34 = vsel %vm27, %v33, 0.0
    %35 = vadd.xlane.f32.xlu0 %v34
    %v36 = vpop.xlane.xlu0 %35
    %v37 = vrcp.pop %v36
    %v38 = vmul.f32 %v33, %v37
    %v39 = vlog2.pop %v36
    %v40 = vmul.f32 %v39, 0.6931472
    %v41 = vsel %vm27, %v38, 0.0
    %v42 = vrot.slane %v41, 4
    %v43 = vadd.f32 %v41, %v42
    %v44 = vrot.slane %v43, 2
    %v45 = vadd.f32 %v43, %v44
    %v46 = vrot.slane %v45, 1
    %v47 = vadd.f32 %v45, %v46
    %v48 = vsub.f32 %v40, %v31
    %v49 = vmul.f32 %v38, %v48
    %v50 = vsel %vm27, %v49, 0.0
    %v51 = vrot.slane %v50, 4
    %v52 = vadd.f32 %v50, %v51
    %v53 = vrot.slane %v52, 2
    %v54 = vadd.f32 %v52, %v53
    %v55 = vrot.slane %v54, 1
    %v56 = vadd.f32 %v54, %v55
    %vm57 = vcmask 253952
    %58 = vst.msk [vmem:[#allocation5] sm:$0x1] %vm57, %v47
    %59 = vst.msk [vmem:[#allocation6] sm:$0x1] %vm57, %v56
    // Predicated region
    $region10: #{tpu_custom_call.1} parent=1 // pred_check
      _
    $region11: #{tpu_custom_call.1} parent=1 // pred_check_branch
      %61 = sbr.rel (0) target = $region13
    $region12: #{tpu_custom_call.1} parent=1 // pred_region
      %63 = vsyncadd [#allocation4], 0
      %s65 = sshll.u32 [#allocation5], 4
      %s66 = int_to_ptr.vmem [resolvable:$true] %s65
      %s67 = sshll.u32 %s1, 4
      %s68 = int_to_ptr.hbm [resolvable:$true] %s67
      %70 = dma.vmem_to_hbm [thread:$0]  %s66, 16, %s68, [#allocation4]
    $region13: #{tpu_custom_call.1} parent=1 // pred_fallthru
      _
    // Predicated region
    $region14: #{tpu_custom_call.1} parent=1 // pred_check
      _
    $region15: #{tpu_custom_call.1} parent=1 // pred_check_branch
      %72 = sbr.rel (0) target = $region17
    $region16: #{tpu_custom_call.1} parent=1 // pred_region
      %74 = vsyncadd [#allocation7], 0
      %s76 = sshll.u32 [#allocation6], 4
      %s77 = int_to_ptr.vmem [resolvable:$true] %s76
      %s78 = sshll.u32 %s2, 4
      %s79 = int_to_ptr.hbm [resolvable:$true] %s78
      %81 = dma.vmem_to_hbm [thread:$0]  %s77, 16, %s79, [#allocation7]
    $region17: #{tpu_custom_call.1} parent=1 // pred_fallthru
      _
    // Predicated region
    $region18: #{tpu_custom_call.1} parent=1 // pred_check
      _
    $region19: #{tpu_custom_call.1} parent=1 // pred_check_branch
      %83 = sbr.rel (0) target = $region21
    $region20: #{tpu_custom_call.1} parent=1 // pred_region
      %85 = dma.done [#allocation4], 16
    $region21: #{tpu_custom_call.1} parent=1 // pred_fallthru
      _
    // Predicated region
    $region22: #{tpu_custom_call.1} parent=1 // pred_check
      _
    $region23: #{tpu_custom_call.1} parent=1 // pred_check_branch
      %87 = sbr.rel (0) target = $region25
    $region24: #{tpu_custom_call.1} parent=1 // pred_region
      %89 = dma.done [#allocation7], 16
    $region25: #{tpu_custom_call.1} parent=1 // pred_fallthru
      _
    %90 = vsyncpa [#allocation3], 1
    %91 = vsyncpa [#allocation4], 1
    %92 = vsyncpa [#allocation7], 1

</llo_original>
